<compile_context>
chip_gen: v7x
topology: tpu7x:2x2x1
jax: 0.10.0
libtpu: 0.0.40
codegen_flags: <defaults>
</compile_context>

<pallas_src>
import math

import jax
import jax.numpy as jnp
from jax.experimental import pallas as pl
from jax.experimental.pallas import tpu as pltpu


def _pred_layer_kernel(x_ref, wt_ref, o_ref):
    # Full-tile matmul on the MXU; accumulate in f32, cast to output dtype.
    o_ref[...] = jnp.dot(
        x_ref[...], wt_ref[...], preferred_element_type=jnp.float32
    ).astype(o_ref.dtype)


def _round_up(x: int, m: int) -> int:
    return ((x + m - 1) // m) * m


def tabnet_pred_layer(
    res: jax.Array,
    m_loss: jax.Array,
    w_t: jax.Array,
    *,
    block_batch: int = 8192,
    min_pallas_batch: int = 256,
):
    """Pallas equivalent of TabNetPredLayer.forward.

    res             : (batch, inp) activations
    m_loss          : scalar (passed through untouched)
    w_t             : (inp, out)  -- transposed nn.Linear weight (no bias)
    block_batch     : max batch-tile rows for the pipelined path
    min_pallas_batch: batches at or below this use a plain XLA dot (set 0 to
                      force the Pallas kernel)
    returns (pred, m_loss) with pred of shape (batch, out), dtype res.dtype
    """
    batch, inp = res.shape
    inp_w, out = w_t.shape
    assert inp == inp_w, "res feature dim must match weight input dim"
    out_dtype = res.dtype

    # ---- small-shape dispatch ------------------------------------------------
    # FLOPs are negligible and the roofline is entirely the HBM read of `res`;
    # a fused XLA dot beats a 1-tile pallas_call for tiny inputs.
    if batch <= min_pallas_batch:
        pred = jnp.dot(res, w_t, preferred_element_type=jnp.float32).astype(out_dtype)
        return pred, m_loss

    # ---- batch tiling ----------------------------------------------------------
    # Aim for >= 4 tiles so the "parallel" batch axis shards across both
    # TensorCores on v7x; never below 8 rows (sublane constraint), never above
    # block_batch. Partial final block is handled by Pallas (no wrapper pad).
    tb = min(block_batch, max(8, _round_up(pl.cdiv(batch, 4), 8)))
    grid = (pl.cdiv(batch, tb),)

    pred = pl.pallas_call(
        _pred_layer_kernel,
        out_shape=jax.ShapeDtypeStruct((batch, out), out_dtype),
        grid_spec=pl.GridSpec(
            grid=grid,
            in_specs=[
                # Streamed activation tiles (double-buffered by Pallas).
                pl.BlockSpec((tb, inp), lambda i: (i, 0)),
                # Weight: constant index_map -> stays resident in VMEM.
                pl.BlockSpec((inp, out), lambda i: (0, 0)),
            ],
            # Last dim equals the full array extent (out), so no lane padding.
            out_specs=pl.BlockSpec((tb, out), lambda i: (i, 0)),
        ),
        compiler_params=pltpu.CompilerParams(
            # Batch tiles are independent -> parallel (megacore split on v7x).
            dimension_semantics=("parallel",),
        ),
    )(res, w_t)

    # M_loss is simply forwarded (no compute needed, stays in plain JAX).
    return pred, m_loss


def init_pred_layer_weight(key, inp: int, out: int, dtype=jnp.float32):
    """Deterministic xavier_normal_ init matching initialize_non_glu."""
    gain = math.sqrt((inp + out) / math.sqrt(4.0 * inp))
    std = gain * math.sqrt(2.0 / (inp + out))
    # torch Linear weight shape is (out, inp); return its transpose (inp, out).
    w = std * jax.random.normal(key, (out, inp), dtype=dtype)
    return jnp.transpose(w)  # (inp, out)


if __name__ == "__main__":
    key = jax.random.PRNGKey(0)
    k_res, k_w, k_loss, k_big = jax.random.split(key, 4)

    # --- small shape consistent with the module -------------------------------
    batch, inp, out = 8, 32, 4
    res = jax.random.normal(k_res, (batch, inp), dtype=jnp.float32)
    m_loss = jnp.abs(jax.random.normal(k_loss, (), dtype=jnp.float32))
    w_t = init_pred_layer_weight(k_w, inp, out)
    ref = res @ w_t

    # 1) default dispatch for a tiny batch -> plain XLA dot fast path
    pred, m_loss_out = tabnet_pred_layer(res, m_loss, w_t)
    jax.block_until_ready((pred, m_loss_out))
    assert pred.shape == (batch, out)
    assert jnp.allclose(pred, ref, atol=1e-5, rtol=1e-5)
    assert jnp.allclose(m_loss_out, m_loss)

    # 2) same small shape forced through the Pallas kernel (single tile)
    pred_k, m_loss_k = tabnet_pred_layer(res, m_loss, w_t, min_pallas_batch=0)
    jax.block_until_ready((pred_k, m_loss_k))
    assert jnp.allclose(pred_k, ref, atol=1e-5, rtol=1e-5)
    assert jnp.allclose(m_loss_k, m_loss)

    # 3) larger batch, NOT a multiple of the tile size: exercises the tiled
    #    Pallas path with a partial final block (no wrapper-side padding/slice).
    big_batch = 2048 + 40
    res_big = jax.random.normal(k_big, (big_batch, inp), dtype=jnp.float32)
    pred_big, _ = tabnet_pred_layer(res_big, m_loss, w_t)
    jax.block_until_ready(pred_big)
    ref_big = res_big @ w_t
    assert pred_big.shape == (big_batch, out)
    assert jnp.allclose(pred_big, ref_big, atol=1e-5, rtol=1e-5)

    print("KERNEL_OK")
</pallas_src>

<mosaic_0001>
module attributes {stable_mosaic.version = 11 : i64} {
  func.func @_pred_layer_kernel(%arg0: i32, %arg1: memref<8x32xf32, #tpu.memory_space<vmem>>, %arg2: memref<32x4xf32, #tpu.memory_space<vmem>>, %arg3: memref<8x4xf32, #tpu.memory_space<vmem>>) attributes {dimension_semantics = [#tpu.dimension_semantics<parallel>], iteration_bounds = array<i64: 1>, scalar_prefetch = 0 : i64, scratch_operands = 0 : i64, tpu.core_type = #tpu.core_type<tc>, window_params = [{transform_indices = @transform_0, window_bounds = array<i64: 8, 32>}, {pipeline_mode = #tpu.pipeline_mode<synchronous>, transform_indices = @transform_1, window_bounds = array<i64: 32, 4>}, {transform_indices = @transform_2, window_bounds = array<i64: 8, 4>}]} {
    %c0 = arith.constant 0 : index
    %c0_0 = arith.constant 0 : index
    %0 = vector.load %arg1[%c0, %c0_0] : memref<8x32xf32, #tpu.memory_space<vmem>>, vector<8x32xf32>
    %c0_1 = arith.constant 0 : index
    %c0_2 = arith.constant 0 : index
    %1 = vector.load %arg2[%c0_1, %c0_2] : memref<32x4xf32, #tpu.memory_space<vmem>>, vector<32x4xf32>
    %cst = arith.constant dense<0.000000e+00> : vector<8x4xf32>
    %2 = tpu.matmul %0, %1, %cst {dimension_numbers = #tpu.dot_dimension_numbers<[1], [0], [0], [1], [0, 0, 1, 1], [], []>} : vector<8x32xf32>, vector<32x4xf32>, vector<8x4xf32> -> vector<8x4xf32>
    %c0_3 = arith.constant 0 : index
    %c0_4 = arith.constant 0 : index
    %3 = vector.load %arg3[%c0_3, %c0_4] : memref<8x4xf32, #tpu.memory_space<vmem>>, vector<8x4xf32>
    tpu.vector_store %arg3[%c0_3, %c0_4], %2 {strides = array<i32>} : memref<8x4xf32, #tpu.memory_space<vmem>>, vector<8x4xf32>,
    return
  }
  func.func @transform_0(%arg0: i32) -> (i32, i32) {
    %c0_i32 = arith.constant 0 : i32
    %c0_i32_0 = arith.constant 0 : i32
    return %arg0, %c0_i32 : i32, i32
  }
  func.func @transform_1(%arg0: i32) -> (i32, i32) {
    %c0_i32 = arith.constant 0 : i32
    %c0_i32_0 = arith.constant 0 : i32
    %c0_i32_1 = arith.constant 0 : i32
    return %c0_i32, %c0_i32_0 : i32, i32
  }
  func.func @transform_2(%arg0: i32) -> (i32, i32) {
    %c0_i32 = arith.constant 0 : i32
    %c0_i32_0 = arith.constant 0 : i32
    return %arg0, %c0_i32 : i32, i32
  }
}

</mosaic_0001>

<llo_original>
// kernel: tpu_custom_call.1
$region0: #{tpu_custom_call.1}
  #allocation0 [shape = 'u32[]', space=smem, size = 0x4, offset = 0x4, fixed_abs, tag = 'smem constant byte address 0x4 - core index']
  #allocation1 [shape = 'u32[144,128]{1,0:T(1,128)}', space=vmem, size = 0x12000, scoped, tag = 'internal scratch']
  %s0 = inlined_call_operand.vmem [shape: f32[8,32], index: 0, kind: input, shape index: {}]
  %s1 = inlined_call_operand.vmem [shape: f32[32,4], index: 1, kind: input, shape index: {}]
  %s2 = inlined_call_operand.vmem [shape: f32[8,4], index: 2, kind: output, shape index: {}]
  %s3 = sld [smem:[#allocation0]]
  $region18: #{tpu_custom_call.1} parent=0
    _
  %s5 = ssub.s32 1, %s3
  %s6 = scalar_select 0, %s5, %s3
  // Predicated region
  $region2: #{tpu_custom_call.1} parent=0 // pred_check
    _
  $region3: #{tpu_custom_call.1} parent=0 // pred_check_branch
    %8 = sbr.rel (0) target = $region5
  $region4: #{tpu_custom_call.1} parent=0 // pred_region
    _
  $region5: #{tpu_custom_call.1} parent=0 // pred_fallthru
    _
  // Predicated region
  $region6: #{tpu_custom_call.1} parent=0 // pred_check
    _
  $region7: #{tpu_custom_call.1} parent=0 // pred_check_branch
    %10 = sbr.rel (0) target = $region9
  $region8: #{tpu_custom_call.1} parent=0 // pred_region
    _
  $region9: #{tpu_custom_call.1} parent=0 // pred_fallthru
    _
  %v11 = vld [vmem:[%s0] sm:$0xff]
  %v12 = vld [vmem:[%s1] sm:$0xff]
  %v13 = vld [vmem:[%s1 + $0x8] sm:$0xff]
  %v14 = vld [vmem:[%s1 + $0x10] sm:$0xff]
  %v15 = vld [vmem:[%s1 + $0x18] sm:$0xff]
  %vm16 = vcmask 261120
  %v18 = vsel %vm16, %v11, 0
  %20 = vmatprep.subr.mxu0 0.0
  %21 = vmatpush1.msra.mxu0 %v12
  %22 = vmatprep.subr.mxu0 0.0
  %23 = vmatpush1.msra.mxu0 %v13
  %24 = vmatprep.subr.mxu0 0.0
  %25 = vmatpush1.msra.mxu0 %v14
  %26 = vmatprep.subr.mxu0 0.0
  %27 = vmatpush1.msra.mxu0 %v15
  %28 = vmatprep.subr.mxu0 0.0
  %29 = vmatpush1.msra.mxu0 0.0
  %30 = vmatprep.subr.mxu0 0.0
  %31 = vmatpush1.msra.mxu0 0.0
  %32 = vmatprep.subr.mxu0 0.0
  %33 = vmatpush1.msra.mxu0 0.0
  %34 = vmatprep.subr.mxu0 0.0
  %35 = vmatpush1.msra.mxu0 0.0
  %36 = vmatprep.subr.mxu0 0.0
  %37 = vmatpush1.msra.mxu0 0.0
  %38 = vmatprep.subr.mxu0 0.0
  %39 = vmatpush1.msra.mxu0 0.0
  %40 = vmatprep.subr.mxu0 0.0
  %41 = vmatpush1.msra.mxu0 0.0
  %42 = vmatprep.subr.mxu0 0.0
  %43 = vmatpush1.msra.mxu0 0.0
  %44 = vmatprep.subr.mxu0 0.0
  %45 = vmatpush1.msra.mxu0 0.0
  %46 = vmatprep.subr.mxu0 0.0
  %47 = vmatpush1.msra.mxu0 0.0
  %48 = vmatprep.subr.mxu0 0.0
  %49 = vmatpush1.msra.mxu0 0.0
  %50 = vmatprep.subr.mxu0 0.0
  %51 = vmatpush1.msra.mxu0 0.0
  %52 = vmatprep.subr.mxu0 0.0
  %53 = vmatpush1.msra.mxu0 0.0
  %54 = vmatprep.subr.mxu0 0.0
  %55 = vmatpush1.msra.mxu0 0.0
  %56 = vmatprep.subr.mxu0 0.0
  %57 = vmatpush1.msra.mxu0 0.0
  %58 = vmatprep.subr.mxu0 0.0
  %59 = vmatpush1.msra.mxu0 0.0
  %60 = vmatprep.subr.mxu0 0.0
  %61 = vmatpush1.msra.mxu0 0.0
  %62 = vmatprep.subr.mxu0 0.0
  %63 = vmatpush1.msra.mxu0 0.0
  %64 = vmatprep.subr.mxu0 0.0
  %65 = vmatpush1.msra.mxu0 0.0
  %66 = vmatprep.subr.mxu0 0.0
  %67 = vmatpush1.msra.mxu0 0.0
  %68 = vmatprep.subr.mxu0 0.0
  %69 = vmatpush1.msra.mxu0 0.0
  %70 = vmatprep.subr.mxu0 0.0
  %71 = vmatpush1.msra.mxu0 0.0
  %72 = vmatprep.subr.mxu0 0.0
  %73 = vmatpush1.msra.mxu0 0.0
  %74 = vmatprep.subr.mxu0 0.0
  %75 = vmatpush1.msra.mxu0 0.0
  %76 = vmatprep.subr.mxu0 0.0
  %77 = vmatpush1.msra.mxu0 0.0
  %78 = vmatprep.subr.mxu0 0.0
  %79 = vmatpush1.msra.mxu0 0.0
  %80 = vmatprep.subr.mxu0 0.0
  %81 = vmatpush1.msra.mxu0 0.0
  %82 = vmatprep.subr.mxu0 0.0
  %83 = vmatpush1.msra.mxu0 0.0
  %84 = vmatprep.mubr.f32.mxu0 0.0
  %85 = vmatmul.mubr.f32.gmra.mrb[0].mxu0 %v18
  %v86 = vpop.f32.mrb[0].mxu0
  %v87 = vadd.f32 0.0, %v86
  %v88 = vpop.f32.mrb[0].mxu0
  %89 = vdwg.mxu0
  %vm90 = vcmask 31744
  %91 = vst.msk [vmem:[%s2] sm:$0xff] %vm90, %v87
  // Predicated region
  $region10: #{tpu_custom_call.1} parent=0 // pred_check
    _
  $region11: #{tpu_custom_call.1} parent=0 // pred_check_branch
    %93 = sbr.rel (0) target = $region13
  $region12: #{tpu_custom_call.1} parent=0 // pred_region
    _
  $region13: #{tpu_custom_call.1} parent=0 // pred_fallthru
    _
  // Predicated region
  $region14: #{tpu_custom_call.1} parent=0 // pred_check
    _
  $region15: #{tpu_custom_call.1} parent=0 // pred_check_branch
    %95 = sbr.rel (0) target = $region17
  $region16: #{tpu_custom_call.1} parent=0 // pred_region
    _
  $region17: #{tpu_custom_call.1} parent=0 // pred_fallthru
    _

</llo_original>
